<compile_context>
chip_gen: v5e
topology: v5e:2x2
jax: 0.10.0
libtpu: 0.0.40
codegen_flags: <defaults>
</compile_context>

<pallas_src>
import functools

import jax
import jax.numpy as jnp
from jax.experimental import pallas as pl
from jax.experimental.pallas import tpu as pltpu


def _round_up(x, m):
    return ((x + m - 1) // m) * m


def _head_kernel(x_ref, w1_ref, shift_ref, w2_ref, b2_ref, out_ref):
    # ---- Linear 1 with BN folded in (MXU), + shift + ReLU (VPU) ----
    h = jnp.dot(x_ref[...], w1_ref[...], preferred_element_type=jnp.float32)
    h = jnp.maximum(h + shift_ref[...], 0.0)
    # ---- Dropout: identity in eval mode ----
    # ---- Linear 2 (MXU) ----
    logits = jnp.dot(h.astype(w2_ref.dtype), w2_ref[...],
                     preferred_element_type=jnp.float32) + b2_ref[...]
    out_ref[...] = logits.astype(out_ref.dtype)


@functools.partial(jax.jit, static_argnames=("eps", "use_bf16", "block_b"))
def classification_head(x, params, eps=1e-5, use_bf16=False, block_b=512):
    """x: (B, input_dim). Returns logits (B, num_classes) in float32."""
    w1 = params["w1"]            # (input_dim, hidden_dim)
    b1 = params["b1"]            # (hidden_dim,)
    gamma = params["gamma"]      # (hidden_dim,)
    beta = params["beta"]        # (hidden_dim,)
    run_mean = params["running_mean"]
    run_var = params["running_var"]
    w2 = params["w2"]            # (hidden_dim, num_classes)
    b2 = params["b2"]            # (num_classes,)

    B, D_in = x.shape
    H = w1.shape[1]
    C = w2.shape[1]

    # ---- Fold BN (inference) into linear-1 weight and a single shift ----
    scale = gamma * jax.lax.rsqrt(run_var + eps)           # (H,)
    bn_shift = beta - run_mean * scale                     # (H,)
    w1_f = w1 * scale[None, :]                             # (D_in, H)
    shift = b1 * scale + bn_shift                          # (H,)

    # ---- Lane-pad hidden and class dims to multiples of 128 ----
    H_pad = _round_up(H, 128)
    C_pad = _round_up(C, 128)
    if H_pad != H:
        w1_f = jnp.pad(w1_f, ((0, 0), (0, H_pad - H)))
        shift = jnp.pad(shift, (0, H_pad - H))             # padded shift = 0
        w2 = jnp.pad(w2, ((0, H_pad - H), (0, 0)))         # padded rows = 0
    if C_pad != C:
        w2 = jnp.pad(w2, ((0, 0), (0, C_pad - C)))
        b2 = jnp.pad(b2, (0, C_pad - C))

    # ---- Batch tiling (sublane-aligned); pad batch if needed ----
    TB = min(block_b, _round_up(B, 8))
    B_pad = _round_up(B, TB)
    if B_pad != B:
        x = jnp.pad(x, ((0, B_pad - B), (0, 0)))
    n_tiles = B_pad // TB

    # ---- Optional bf16 MXU operands (f32 accumulation in-kernel) ----
    if use_bf16:
        x = x.astype(jnp.bfloat16)
        w1_f = w1_f.astype(jnp.bfloat16)
        w2 = w2.astype(jnp.bfloat16)

    shift_2d = shift.reshape(1, H_pad).astype(jnp.float32)
    b2_2d = b2.reshape(1, C_pad).astype(jnp.float32)

    cost = pl.CostEstimate(
        flops=2 * B_pad * (D_in * H_pad + H_pad * C_pad),
        transcendentals=0,
        bytes_accessed=(x.size * x.dtype.itemsize
                        + w1_f.size * w1_f.dtype.itemsize
                        + w2.size * w2.dtype.itemsize
                        + shift_2d.size * 4 + b2_2d.size * 4
                        + B_pad * C_pad * 4),
    )

    out = pl.pallas_call(
        _head_kernel,
        out_shape=jax.ShapeDtypeStruct((B_pad, C_pad), jnp.float32),
        grid=(n_tiles,),
        in_specs=[
            pl.BlockSpec((TB, D_in), lambda i: (i, 0)),     # x (streamed)
            pl.BlockSpec((D_in, H_pad), lambda i: (0, 0)),  # w1' (resident)
            pl.BlockSpec((1, H_pad), lambda i: (0, 0)),     # shift (resident)
            pl.BlockSpec((H_pad, C_pad), lambda i: (0, 0)),  # w2 (resident)
            pl.BlockSpec((1, C_pad), lambda i: (0, 0)),     # b2 (resident)
        ],
        out_specs=pl.BlockSpec((TB, C_pad), lambda i: (i, 0)),
        compiler_params=pltpu.CompilerParams(
            dimension_semantics=("parallel",),
        ),
        cost_estimate=cost,
    )(x, w1_f, shift_2d, w2, b2_2d)

    # Slice off batch / class padding.
    return out[:B, :C]


def _reference(x, params, eps=1e-5):
    h = x @ params["w1"] + params["b1"]
    h = (h - params["running_mean"]) / jnp.sqrt(params["running_var"] + eps)
    h = h * params["gamma"] + params["beta"]
    h = jnp.maximum(h, 0.0)
    return h @ params["w2"] + params["b2"]


if __name__ == "__main__":
    # Module-default feature dims, small batch.
    B, D_IN, H, C = 8, 512, 256, 10

    key = jax.random.PRNGKey(0)
    ks = jax.random.split(key, 8)

    params = {
        "w1": jax.random.normal(ks[0], (D_IN, H), jnp.float32) * 0.05,
        "b1": jax.random.normal(ks[1], (H,), jnp.float32) * 0.01,
        "gamma": 1.0 + 0.1 * jax.random.normal(ks[2], (H,), jnp.float32),
        "beta": 0.1 * jax.random.normal(ks[3], (H,), jnp.float32),
        "running_mean": 0.05 * jax.random.normal(ks[4], (H,), jnp.float32),
        "running_var": 1.0 + 0.1 * jax.random.uniform(ks[5], (H,), jnp.float32),
        "w2": jax.random.normal(ks[6], (H, C), jnp.float32) * 0.05,
        "b2": 0.01 * jax.random.normal(ks[7], (C,), jnp.float32),
    }

    x = jax.random.normal(jax.random.PRNGKey(42), (B, D_IN), jnp.float32)

    ref = _reference(x, params)

    # f32 path: tight tolerance.
    logits = classification_head(x, params)
    jax.block_until_ready(logits)
    assert logits.shape == (B, C)
    assert jnp.allclose(logits, ref, atol=1e-4, rtol=1e-4), "f32 mismatch vs reference"

    # bf16-operand path (v6e/v7x traffic-reduction mode): looser tolerance,
    # accumulation stays f32 inside the kernel.
    logits_bf16 = classification_head(x, params, use_bf16=True)
    jax.block_until_ready(logits_bf16)
    assert logits_bf16.shape == (B, C)
    assert jnp.allclose(logits_bf16, ref, atol=5e-2, rtol=5e-2), "bf16 mismatch vs reference"

    print("KERNEL_OK")
</pallas_src>

<mosaic_0001>
module attributes {stable_mosaic.version = 11 : i64} {
  func.func @_head_kernel(%arg0: i32, %arg1: memref<8x512xf32, #tpu.memory_space<vmem>>, %arg2: memref<512x256xf32, #tpu.memory_space<vmem>>, %arg3: memref<1x256xf32, #tpu.memory_space<vmem>>, %arg4: memref<256x128xf32, #tpu.memory_space<vmem>>, %arg5: memref<1x128xf32, #tpu.memory_space<vmem>>, %arg6: memref<8x128xf32, #tpu.memory_space<vmem>>) attributes {dimension_semantics = [#tpu.dimension_semantics<parallel>], iteration_bounds = array<i64: 1>, scalar_prefetch = 0 : i64, scratch_operands = 0 : i64, tpu.core_type = #tpu.core_type<tc>, window_params = [{transform_indices = @transform_0, window_bounds = array<i64: 8, 512>}, {pipeline_mode = #tpu.pipeline_mode<synchronous>, transform_indices = @transform_1, window_bounds = array<i64: 512, 256>}, {pipeline_mode = #tpu.pipeline_mode<synchronous>, transform_indices = @transform_2, window_bounds = array<i64: 1, 256>}, {pipeline_mode = #tpu.pipeline_mode<synchronous>, transform_indices = @transform_3, window_bounds = array<i64: 256, 128>}, {pipeline_mode = #tpu.pipeline_mode<synchronous>, transform_indices = @transform_4, window_bounds = array<i64: 1, 128>}, {transform_indices = @transform_5, window_bounds = array<i64: 8, 128>}]} {
    %c0 = arith.constant 0 : index
    %c0_0 = arith.constant 0 : index
    %0 = vector.load %arg1[%c0, %c0_0] : memref<8x512xf32, #tpu.memory_space<vmem>>, vector<8x512xf32>
    %c0_1 = arith.constant 0 : index
    %c0_2 = arith.constant 0 : index
    %1 = vector.load %arg2[%c0_1, %c0_2] : memref<512x256xf32, #tpu.memory_space<vmem>>, vector<512x256xf32>
    %cst = arith.constant dense<0.000000e+00> : vector<8x256xf32>
    %2 = tpu.matmul %0, %1, %cst {dimension_numbers = #tpu.dot_dimension_numbers<[1], [0], [0], [1], [0, 0, 1, 1], [], []>} : vector<8x512xf32>, vector<512x256xf32>, vector<8x256xf32> -> vector<8x256xf32>
    %c0_3 = arith.constant 0 : index
    %c0_4 = arith.constant 0 : index
    %3 = vector.load %arg3[%c0_3, %c0_4] : memref<1x256xf32, #tpu.memory_space<vmem>>, vector<1x256xf32>
    %4 = vector.broadcast %3 : vector<1x256xf32> to vector<8x256xf32>
    %5 = arith.addf %2, %4 : vector<8x256xf32>
    %cst_5 = arith.constant 0.000000e+00 : f32
    %6 = vector.broadcast %cst_5 : f32 to vector<8x256xf32>
    %7 = arith.maximumf %5, %6 : vector<8x256xf32>
    %c0_6 = arith.constant 0 : index
    %c0_7 = arith.constant 0 : index
    %8 = vector.load %arg4[%c0_6, %c0_7] : memref<256x128xf32, #tpu.memory_space<vmem>>, vector<256x128xf32>
    %cst_8 = arith.constant dense<0.000000e+00> : vector<8x128xf32>
    %9 = tpu.matmul %7, %8, %cst_8 {dimension_numbers = #tpu.dot_dimension_numbers<[1], [0], [0], [1], [0, 0, 1, 1], [], []>} : vector<8x256xf32>, vector<256x128xf32>, vector<8x128xf32> -> vector<8x128xf32>
    %c0_9 = arith.constant 0 : index
    %c0_10 = arith.constant 0 : index
    %10 = vector.load %arg5[%c0_9, %c0_10] : memref<1x128xf32, #tpu.memory_space<vmem>>, vector<1x128xf32>
    %11 = vector.broadcast %10 : vector<1x128xf32> to vector<8x128xf32>
    %12 = arith.addf %9, %11 : vector<8x128xf32>
    %c0_11 = arith.constant 0 : index
    %c0_12 = arith.constant 0 : index
    %13 = vector.load %arg6[%c0_11, %c0_12] : memref<8x128xf32, #tpu.memory_space<vmem>>, vector<8x128xf32>
    tpu.vector_store %arg6[%c0_11, %c0_12], %12 {strides = array<i32>} : memref<8x128xf32, #tpu.memory_space<vmem>>, vector<8x128xf32>,
    return
  }
  func.func @transform_0(%arg0: i32) -> (i32, i32) {
    %c0_i32 = arith.constant 0 : i32
    %c0_i32_0 = arith.constant 0 : i32
    return %arg0, %c0_i32 : i32, i32
  }
  func.func @transform_1(%arg0: i32) -> (i32, i32) {
    %c0_i32 = arith.constant 0 : i32
    %c0_i32_0 = arith.constant 0 : i32
    %c0_i32_1 = arith.constant 0 : i32
    return %c0_i32, %c0_i32_0 : i32, i32
  }
  func.func @transform_2(%arg0: i32) -> (i32, i32) {
    %c0_i32 = arith.constant 0 : i32
    %c0_i32_0 = arith.constant 0 : i32
    %c0_i32_1 = arith.constant 0 : i32
    return %c0_i32, %c0_i32_0 : i32, i32
  }
  func.func @transform_3(%arg0: i32) -> (i32, i32) {
    %c0_i32 = arith.constant 0 : i32
    %c0_i32_0 = arith.constant 0 : i32
    %c0_i32_1 = arith.constant 0 : i32
    return %c0_i32, %c0_i32_0 : i32, i32
  }
  func.func @transform_4(%arg0: i32) -> (i32, i32) {
    %c0_i32 = arith.constant 0 : i32
    %c0_i32_0 = arith.constant 0 : i32
    %c0_i32_1 = arith.constant 0 : i32
    return %c0_i32, %c0_i32_0 : i32, i32
  }
  func.func @transform_5(%arg0: i32) -> (i32, i32) {
    %c0_i32 = arith.constant 0 : i32
    %c0_i32_0 = arith.constant 0 : i32
    return %arg0, %c0_i32 : i32, i32
  }
}

</mosaic_0001>

<llo_original>
// kernel: classification_head.1
$region0: #{classification_head.1}
  #allocation0 [shape = 'u32[]', space=smem, size = 0x4, offset = 0x4, fixed_abs, tag = 'smem constant byte address 0x4 - core index']
  #allocation1 [shape = 'u32[72,128]{1,0:T(1,128)}', space=vmem, size = 0x9000, scoped, tag = 'internal scratch']
  %s0 = inlined_call_operand.vmem [shape: f32[8,512], index: 0, kind: input, shape index: {}]
  %s1 = inlined_call_operand.vmem [shape: f32[512,256], index: 1, kind: input, shape index: {}]
  %s2 = inlined_call_operand.vmem [shape: f32[1,256], index: 2, kind: input, shape index: {}]
  %s3 = inlined_call_operand.vmem [shape: f32[256,128], index: 3, kind: input, shape index: {}]
  %s4 = inlined_call_operand.vmem [shape: f32[1,128], index: 4, kind: input, shape index: {}]
  %s5 = inlined_call_operand.hbm [shape: f32[8,128], index: 5, kind: output, shape index: {}]
  %s6 = sld [smem:[#allocation0]]
  $region30: #{classification_head.1} parent=0
    _
  %s8 = ssub.s32 1, %s6
  %s9 = scalar_select 0, %s8, %s6
  $region1: #{classification_head.1} parent=0
    #allocation2 [shape = 'u8[4096]{0}', space=vmem, size = 0x1000, scoped, tag = 'output window, operand 0, single buffered']
    #allocation3 [shape = 's32[1]{0}', space=sflag, size = 0x4, scoped, tag = 'scoped memory for classification_head.1']
    %10 = vsyncpa [#allocation3], 0
    // Predicated region
    $region2: #{classification_head.1} parent=1 // pred_check
      _
    $region3: #{classification_head.1} parent=1 // pred_check_branch
      %12 = sbr.rel (0) target = $region5
    $region4: #{classification_head.1} parent=1 // pred_region
      _
    $region5: #{classification_head.1} parent=1 // pred_fallthru
      _
    // Predicated region
    $region6: #{classification_head.1} parent=1 // pred_check
      _
    $region7: #{classification_head.1} parent=1 // pred_check_branch
      %14 = sbr.rel (0) target = $region9
    $region8: #{classification_head.1} parent=1 // pred_region
      _
    $region9: #{classification_head.1} parent=1 // pred_fallthru
      _
    // Predicated region
    $region10: #{classification_head.1} parent=1 // pred_check
      _
    $region11: #{classification_head.1} parent=1 // pred_check_branch
      %16 = sbr.rel (0) target = $region13
    $region12: #{classification_head.1} parent=1 // pred_region
      _
    $region13: #{classification_head.1} parent=1 // pred_fallthru
      _
    // Predicated region
    $region14: #{classification_head.1} parent=1 // pred_check
      _
    $region15: #{classification_head.1} parent=1 // pred_check_branch
      %18 = sbr.rel (0) target = $region17
    $region16: #{classification_head.1} parent=1 // pred_region
      _
    $region17: #{classification_head.1} parent=1 // pred_fallthru
      _
    // Predicated region
    $region18: #{classification_head.1} parent=1 // pred_check
      _
    $region19: #{classification_head.1} parent=1 // pred_check_branch
      %20 = sbr.rel (0) target = $region21
    $region20: #{classification_head.1} parent=1 // pred_region
      _
    $region21: #{classification_head.1} parent=1 // pred_fallthru
      _
    %v21 = vld [vmem:[%s0] sm:$0xff]
    %v22 = vld [vmem:[%s0 + $0x8] sm:$0xff]
    %v23 = vld [vmem:[%s0 + $0x10] sm:$0xff]
    %v24 = vld [vmem:[%s0 + $0x18] sm:$0xff]
    %v25 = vld [vmem:[%s1] sm:$0xff]
    %v26 = vld [vmem:[%s1 + $0x8] sm:$0xff]
    %v27 = vld [vmem:[%s1 + $0x10] sm:$0xff]
    %v28 = vld [vmem:[%s1 + $0x18] sm:$0xff]
    %v29 = vld [vmem:[%s1 + $0x20] sm:$0xff]
    %v30 = vld [vmem:[%s1 + $0x28] sm:$0xff]
    %v31 = vld [vmem:[%s1 + $0x30] sm:$0xff]
    %v32 = vld [vmem:[%s1 + $0x38] sm:$0xff]
    %v33 = vld [vmem:[%s1 + $0x40] sm:$0xff]
    %v34 = vld [vmem:[%s1 + $0x48] sm:$0xff]
    %v35 = vld [vmem:[%s1 + $0x50] sm:$0xff]
    %v36 = vld [vmem:[%s1 + $0x58] sm:$0xff]
    %v37 = vld [vmem:[%s1 + $0x60] sm:$0xff]
    %v38 = vld [vmem:[%s1 + $0x68] sm:$0xff]
    %v39 = vld [vmem:[%s1 + $0x70] sm:$0xff]
    %v40 = vld [vmem:[%s1 + $0x78] sm:$0xff]
    %v41 = vld [vmem:[%s1 + $0x80] sm:$0xff]
    %v42 = vld [vmem:[%s1 + $0x88] sm:$0xff]
    %v43 = vld [vmem:[%s1 + $0x90] sm:$0xff]
    %v44 = vld [vmem:[%s1 + $0x98] sm:$0xff]
    %v45 = vld [vmem:[%s1 + $0xa0] sm:$0xff]
    %v46 = vld [vmem:[%s1 + $0xa8] sm:$0xff]
    %v47 = vld [vmem:[%s1 + $0xb0] sm:$0xff]
    %v48 = vld [vmem:[%s1 + $0xb8] sm:$0xff]
    %v49 = vld [vmem:[%s1 + $0xc0] sm:$0xff]
    %v50 = vld [vmem:[%s1 + $0xc8] sm:$0xff]
    %v51 = vld [vmem:[%s1 + $0xd0] sm:$0xff]
    %v52 = vld [vmem:[%s1 + $0xd8] sm:$0xff]
    %v53 = vld [vmem:[%s1 + $0xe0] sm:$0xff]
    %v54 = vld [vmem:[%s1 + $0xe8] sm:$0xff]
    %v55 = vld [vmem:[%s1 + $0xf0] sm:$0xff]
    %v56 = vld [vmem:[%s1 + $0xf8] sm:$0xff]
    %v57 = vld [vmem:[%s1 + $0x100] sm:$0xff]
    %v58 = vld [vmem:[%s1 + $0x108] sm:$0xff]
    %v59 = vld [vmem:[%s1 + $0x110] sm:$0xff]
    %v60 = vld [vmem:[%s1 + $0x118] sm:$0xff]
    %v61 = vld [vmem:[%s1 + $0x120] sm:$0xff]
    %v62 = vld [vmem:[%s1 + $0x128] sm:$0xff]
    %v63 = vld [vmem:[%s1 + $0x130] sm:$0xff]
    %v64 = vld [vmem:[%s1 + $0x138] sm:$0xff]
    %v65 = vld [vmem:[%s1 + $0x140] sm:$0xff]
    %v66 = vld [vmem:[%s1 + $0x148] sm:$0xff]
    %v67 = vld [vmem:[%s1 + $0x150] sm:$0xff]
    %v68 = vld [vmem:[%s1 + $0x158] sm:$0xff]
    %v69 = vld [vmem:[%s1 + $0x160] sm:$0xff]
    %v70 = vld [vmem:[%s1 + $0x168] sm:$0xff]
    %v71 = vld [vmem:[%s1 + $0x170] sm:$0xff]
    %v72 = vld [vmem:[%s1 + $0x178] sm:$0xff]
    %v73 = vld [vmem:[%s1 + $0x180] sm:$0xff]
    %v74 = vld [vmem:[%s1 + $0x188] sm:$0xff]
    %v75 = vld [vmem:[%s1 + $0x190] sm:$0xff]
    %v76 = vld [vmem:[%s1 + $0x198] sm:$0xff]
    %v77 = vld [vmem:[%s1 + $0x1a0] sm:$0xff]
    %v78 = vld [vmem:[%s1 + $0x1a8] sm:$0xff]
    %v79 = vld [vmem:[%s1 + $0x1b0] sm:$0xff]
    %v80 = vld [vmem:[%s1 + $0x1b8] sm:$0xff]
    %v81 = vld [vmem:[%s1 + $0x1c0] sm:$0xff]
    %v82 = vld [vmem:[%s1 + $0x1c8] sm:$0xff]
    %v83 = vld [vmem:[%s1 + $0x1d0] sm:$0xff]
    %v84 = vld [vmem:[%s1 + $0x1d8] sm:$0xff]
    %v85 = vld [vmem:[%s1 + $0x1e0] sm:$0xff]
    %v86 = vld [vmem:[%s1 + $0x1e8] sm:$0xff]
    %v87 = vld [vmem:[%s1 + $0x1f0] sm:$0xff]
    %v88 = vld [vmem:[%s1 + $0x1f8] sm:$0xff]
    %v89 = vld [vmem:[%s1 + $0x200] sm:$0xff]
    %v90 = vld [vmem:[%s1 + $0x208] sm:$0xff]
    %v91 = vld [vmem:[%s1 + $0x210] sm:$0xff]
    %v92 = vld [vmem:[%s1 + $0x218] sm:$0xff]
    %v93 = vld [vmem:[%s1 + $0x220] sm:$0xff]
    %v94 = vld [vmem:[%s1 + $0x228] sm:$0xff]
    %v95 = vld [vmem:[%s1 + $0x230] sm:$0xff]
    %v96 = vld [vmem:[%s1 + $0x238] sm:$0xff]
    %v97 = vld [vmem:[%s1 + $0x240] sm:$0xff]
    %v98 = vld [vmem:[%s1 + $0x248] sm:$0xff]
    %v99 = vld [vmem:[%s1 + $0x250] sm:$0xff]
    %v100 = vld [vmem:[%s1 + $0x258] sm:$0xff]
    %v101 = vld [vmem:[%s1 + $0x260] sm:$0xff]
    %v102 = vld [vmem:[%s1 + $0x268] sm:$0xff]
    %v103 = vld [vmem:[%s1 + $0x270] sm:$0xff]
    %v104 = vld [vmem:[%s1 + $0x278] sm:$0xff]
    %v105 = vld [vmem:[%s1 + $0x280] sm:$0xff]
    %v106 = vld [vmem:[%s1 + $0x288] sm:$0xff]
    %v107 = vld [vmem:[%s1 + $0x290] sm:$0xff]
    %v108 = vld [vmem:[%s1 + $0x298] sm:$0xff]
    %v109 = vld [vmem:[%s1 + $0x2a0] sm:$0xff]
    %v110 = vld [vmem:[%s1 + $0x2a8] sm:$0xff]
    %v111 = vld [vmem:[%s1 + $0x2b0] sm:$0xff]
    %v112 = vld [vmem:[%s1 + $0x2b8] sm:$0xff]
    %v113 = vld [vmem:[%s1 + $0x2c0] sm:$0xff]
    %v114 = vld [vmem:[%s1 + $0x2c8] sm:$0xff]
    %v115 = vld [vmem:[%s1 + $0x2d0] sm:$0xff]
    %v116 = vld [vmem:[%s1 + $0x2d8] sm:$0xff]
    %v117 = vld [vmem:[%s1 + $0x2e0] sm:$0xff]
    %v118 = vld [vmem:[%s1 + $0x2e8] sm:$0xff]
    %v119 = vld [vmem:[%s1 + $0x2f0] sm:$0xff]
    %v120 = vld [vmem:[%s1 + $0x2f8] sm:$0xff]
    %v121 = vld [vmem:[%s1 + $0x300] sm:$0xff]
    %v122 = vld [vmem:[%s1 + $0x308] sm:$0xff]
    %v123 = vld [vmem:[%s1 + $0x310] sm:$0xff]
    %v124 = vld [vmem:[%s1 + $0x318] sm:$0xff]
    %v125 = vld [vmem:[%s1 + $0x320] sm:$0xff]
    %v126 = vld [vmem:[%s1 + $0x328] sm:$0xff]
    %v127 = vld [vmem:[%s1 + $0x330] sm:$0xff]
    %v128 = vld [vmem:[%s1 + $0x338] sm:$0xff]
    %v129 = vld [vmem:[%s1 + $0x340] sm:$0xff]
    %v130 = vld [vmem:[%s1 + $0x348] sm:$0xff]
    %v131 = vld [vmem:[%s1 + $0x350] sm:$0xff]
    %v132 = vld [vmem:[%s1 + $0x358] sm:$0xff]
    %v133 = vld [vmem:[%s1 + $0x360] sm:$0xff]
    %v134 = vld [vmem:[%s1 + $0x368] sm:$0xff]
    %v135 = vld [vmem:[%s1 + $0x370] sm:$0xff]
    %v136 = vld [vmem:[%s1 + $0x378] sm:$0xff]
    %v137 = vld [vmem:[%s1 + $0x380] sm:$0xff]
    %v138 = vld [vmem:[%s1 + $0x388] sm:$0xff]
    %v139 = vld [vmem:[%s1 + $0x390] sm:$0xff]
    %v140 = vld [vmem:[%s1 + $0x398] sm:$0xff]
    %v141 = vld [vmem:[%s1 + $0x3a0] sm:$0xff]
    %v142 = vld [vmem:[%s1 + $0x3a8] sm:$0xff]
    %v143 = vld [vmem:[%s1 + $0x3b0] sm:$0xff]
    %v144 = vld [vmem:[%s1 + $0x3b8] sm:$0xff]
    %v145 = vld [vmem:[%s1 + $0x3c0] sm:$0xff]
    %v146 = vld [vmem:[%s1 + $0x3c8] sm:$0xff]
    %v147 = vld [vmem:[%s1 + $0x3d0] sm:$0xff]
    %v148 = vld [vmem:[%s1 + $0x3d8] sm:$0xff]
    %v149 = vld [vmem:[%s1 + $0x3e0] sm:$0xff]
    %v150 = vld [vmem:[%s1 + $0x3e8] sm:$0xff]
    %v151 = vld [vmem:[%s1 + $0x3f0] sm:$0xff]
    %v152 = vld [vmem:[%s1 + $0x3f8] sm:$0xff]
    %v153 = vld [vmem:[%s2] sm:$0x3]
    %v155 = vperm.slane %v153, 0
    %v156 = vperm.slane %v153, 1
    %159 = vmatpush.msra.mxu0 %v55
    %160 = vmatpush.msra.mxu0 %v53
    %161 = vmatpush.msra.mxu0 %v51
    %162 = vmatpush.msra.mxu0 %v49
    %163 = vmatpush.msra.mxu0 %v47
    %164 = vmatpush.msra.mxu0 %v45
    %165 = vmatpush.msra.mxu0 %v43
    %166 = vmatpush.msra.mxu0 %v41
    %167 = vmatpush.msra.mxu0 %v39
    %168 = vmatpush.msra.mxu0 %v37
    %169 = vmatpush.msra.mxu0 %v35
    %170 = vmatpush.msra.mxu0 %v33
    %171 = vmatpush.msra.mxu0 %v31
    %172 = vmatpush.msra.mxu0 %v29
    %173 = vmatpush.msra.mxu0 %v27
    %174 = vmatpush.msra.mxu0 %v25
    %175 = vmatmul.f32.gmra.mxu0 %v21
    %v176 = vpop.f32.mrf.mxu0
    %v177 = vadd.f32 %v155, %v176
    %178 = vdwg.mxu0
    %179 = vmatpush.msra.mxu0 %v87
    %180 = vmatpush.msra.mxu0 %v85
    %181 = vmatpush.msra.mxu0 %v83
    %182 = vmatpush.msra.mxu0 %v81
    %183 = vmatpush.msra.mxu0 %v79
    %184 = vmatpush.msra.mxu0 %v77
    %185 = vmatpush.msra.mxu0 %v75
    %186 = vmatpush.msra.mxu0 %v73
    %187 = vmatpush.msra.mxu0 %v71
    %188 = vmatpush.msra.mxu0 %v69
    %189 = vmatpush.msra.mxu0 %v67
    %190 = vmatpush.msra.mxu0 %v65
    %191 = vmatpush.msra.mxu0 %v63
    %192 = vmatpush.msra.mxu0 %v61
    %193 = vmatpush.msra.mxu0 %v59
    %194 = vmatpush.msra.mxu0 %v57
    %195 = vmatmul.f32.gmra.mxu0 %v22
    %v196 = vpop.f32.mrf.mxu0
    %v197 = vadd.f32 %v177, %v196
    %198 = vdwg.mxu0
    %199 = vmatpush.msra.mxu0 %v119
    %200 = vmatpush.msra.mxu0 %v117
    %201 = vmatpush.msra.mxu0 %v115
    %202 = vmatpush.msra.mxu0 %v113
    %203 = vmatpush.msra.mxu0 %v111
    %204 = vmatpush.msra.mxu0 %v109
    %205 = vmatpush.msra.mxu0 %v107
    %206 = vmatpush.msra.mxu0 %v105
    %207 = vmatpush.msra.mxu0 %v103
    %208 = vmatpush.msra.mxu0 %v101
    %209 = vmatpush.msra.mxu0 %v99
    %210 = vmatpush.msra.mxu0 %v97
    %211 = vmatpush.msra.mxu0 %v95
    %212 = vmatpush.msra.mxu0 %v93
    %213 = vmatpush.msra.mxu0 %v91
    %214 = vmatpush.msra.mxu0 %v89
    %215 = vmatmul.f32.gmra.mxu0 %v23
    %v216 = vpop.f32.mrf.mxu0
    %v217 = vadd.f32 %v197, %v216
    %218 = vdwg.mxu0
    %219 = vmatpush.msra.mxu0 %v151
    %220 = vmatpush.msra.mxu0 %v149
    %221 = vmatpush.msra.mxu0 %v147
    %222 = vmatpush.msra.mxu0 %v145
    %223 = vmatpush.msra.mxu0 %v143
    %224 = vmatpush.msra.mxu0 %v141
    %225 = vmatpush.msra.mxu0 %v139
    %226 = vmatpush.msra.mxu0 %v137
    %227 = vmatpush.msra.mxu0 %v135
    %228 = vmatpush.msra.mxu0 %v133
    %229 = vmatpush.msra.mxu0 %v131
    %230 = vmatpush.msra.mxu0 %v129
    %231 = vmatpush.msra.mxu0 %v127
    %232 = vmatpush.msra.mxu0 %v125
    %233 = vmatpush.msra.mxu0 %v123
    %234 = vmatpush.msra.mxu0 %v121
    %235 = vmatmul.f32.gmra.mxu0 %v24
    %v236 = vpop.f32.mrf.mxu0
    %v237 = vadd.f32 %v217, %v236
    %238 = vdwg.mxu0
    %239 = vmatpush.msra.mxu0 %v56
    %240 = vmatpush.msra.mxu0 %v54
    %241 = vmatpush.msra.mxu0 %v52
    %242 = vmatpush.msra.mxu0 %v50
    %243 = vmatpush.msra.mxu0 %v48
    %244 = vmatpush.msra.mxu0 %v46
    %245 = vmatpush.msra.mxu0 %v44
    %246 = vmatpush.msra.mxu0 %v42
    %247 = vmatpush.msra.mxu0 %v40
    %248 = vmatpush.msra.mxu0 %v38
    %249 = vmatpush.msra.mxu0 %v36
    %250 = vmatpush.msra.mxu0 %v34
    %251 = vmatpush.msra.mxu0 %v32
    %252 = vmatpush.msra.mxu0 %v30
    %253 = vmatpush.msra.mxu0 %v28
    %254 = vmatpush.msra.mxu0 %v26
    %255 = vmatmul.f32.gmra.mxu0 %v21
    %v256 = vpop.f32.mrf.mxu0
    %v257 = vadd.f32 %v156, %v256
    %258 = vdwg.mxu0
    %259 = vmatpush.msra.mxu0 %v88
    %260 = vmatpush.msra.mxu0 %v86
    %261 = vmatpush.msra.mxu0 %v84
    %262 = vmatpush.msra.mxu0 %v82
    %263 = vmatpush.msra.mxu0 %v80
    %264 = vmatpush.msra.mxu0 %v78
    %265 = vmatpush.msra.mxu0 %v76
    %266 = vmatpush.msra.mxu0 %v74
    %267 = vmatpush.msra.mxu0 %v72
    %268 = vmatpush.msra.mxu0 %v70
    %269 = vmatpush.msra.mxu0 %v68
    %270 = vmatpush.msra.mxu0 %v66
    %271 = vmatpush.msra.mxu0 %v64
    %272 = vmatpush.msra.mxu0 %v62
    %273 = vmatpush.msra.mxu0 %v60
    %274 = vmatpush.msra.mxu0 %v58
    %275 = vmatmul.f32.gmra.mxu0 %v22
    %v276 = vpop.f32.mrf.mxu0
    %v277 = vadd.f32 %v257, %v276
    %278 = vdwg.mxu0
    %279 = vmatpush.msra.mxu0 %v120
    %280 = vmatpush.msra.mxu0 %v118
    %281 = vmatpush.msra.mxu0 %v116
    %282 = vmatpush.msra.mxu0 %v114
    %283 = vmatpush.msra.mxu0 %v112
    %284 = vmatpush.msra.mxu0 %v110
    %285 = vmatpush.msra.mxu0 %v108
    %286 = vmatpush.msra.mxu0 %v106
    %287 = vmatpush.msra.mxu0 %v104
    %288 = vmatpush.msra.mxu0 %v102
    %289 = vmatpush.msra.mxu0 %v100
    %290 = vmatpush.msra.mxu0 %v98
    %291 = vmatpush.msra.mxu0 %v96
    %292 = vmatpush.msra.mxu0 %v94
    %293 = vmatpush.msra.mxu0 %v92
    %294 = vmatpush.msra.mxu0 %v90
    %295 = vmatmul.f32.gmra.mxu0 %v23
    %v296 = vpop.f32.mrf.mxu0
    %v297 = vadd.f32 %v277, %v296
    %298 = vdwg.mxu0
    %299 = vmatpush.msra.mxu0 %v152
    %300 = vmatpush.msra.mxu0 %v150
    %301 = vmatpush.msra.mxu0 %v148
    %302 = vmatpush.msra.mxu0 %v146
    %303 = vmatpush.msra.mxu0 %v144
    %304 = vmatpush.msra.mxu0 %v142
    %305 = vmatpush.msra.mxu0 %v140
    %306 = vmatpush.msra.mxu0 %v138
    %307 = vmatpush.msra.mxu0 %v136
    %308 = vmatpush.msra.mxu0 %v134
    %309 = vmatpush.msra.mxu0 %v132
    %310 = vmatpush.msra.mxu0 %v130
    %311 = vmatpush.msra.mxu0 %v128
    %312 = vmatpush.msra.mxu0 %v126
    %313 = vmatpush.msra.mxu0 %v124
    %314 = vmatpush.msra.mxu0 %v122
    %315 = vmatmul.f32.gmra.mxu0 %v24
    %v316 = vpop.f32.mrf.mxu0
    %v317 = vadd.f32 %v297, %v316
    %318 = vdwg.mxu0
    %v319 = vmax.f32 %v237, 0.0
    %v320 = vmax.f32 %v317, 0.0
    %v321 = vld [vmem:[%s3] sm:$0xff]
    %v322 = vld [vmem:[%s3 + $0x8] sm:$0xff]
    %v323 = vld [vmem:[%s3 + $0x10] sm:$0xff]
    %v324 = vld [vmem:[%s3 + $0x18] sm:$0xff]
    %v325 = vld [vmem:[%s3 + $0x20] sm:$0xff]
    %v326 = vld [vmem:[%s3 + $0x28] sm:$0xff]
    %v327 = vld [vmem:[%s3 + $0x30] sm:$0xff]
    %v328 = vld [vmem:[%s3 + $0x38] sm:$0xff]
    %v329 = vld [vmem:[%s3 + $0x40] sm:$0xff]
    %v330 = vld [vmem:[%s3 + $0x48] sm:$0xff]
    %v331 = vld [vmem:[%s3 + $0x50] sm:$0xff]
    %v332 = vld [vmem:[%s3 + $0x58] sm:$0xff]
    %v333 = vld [vmem:[%s3 + $0x60] sm:$0xff]
    %v334 = vld [vmem:[%s3 + $0x68] sm:$0xff]
    %v335 = vld [vmem:[%s3 + $0x70] sm:$0xff]
    %v336 = vld [vmem:[%s3 + $0x78] sm:$0xff]
    %v337 = vld [vmem:[%s3 + $0x80] sm:$0xff]
    %v338 = vld [vmem:[%s3 + $0x88] sm:$0xff]
    %v339 = vld [vmem:[%s3 + $0x90] sm:$0xff]
    %v340 = vld [vmem:[%s3 + $0x98] sm:$0xff]
    %v341 = vld [vmem:[%s3 + $0xa0] sm:$0xff]
    %v342 = vld [vmem:[%s3 + $0xa8] sm:$0xff]
    %v343 = vld [vmem:[%s3 + $0xb0] sm:$0xff]
    %v344 = vld [vmem:[%s3 + $0xb8] sm:$0xff]
    %v345 = vld [vmem:[%s3 + $0xc0] sm:$0xff]
    %v346 = vld [vmem:[%s3 + $0xc8] sm:$0xff]
    %v347 = vld [vmem:[%s3 + $0xd0] sm:$0xff]
    %v348 = vld [vmem:[%s3 + $0xd8] sm:$0xff]
    %v349 = vld [vmem:[%s3 + $0xe0] sm:$0xff]
    %v350 = vld [vmem:[%s3 + $0xe8] sm:$0xff]
    %v351 = vld [vmem:[%s3 + $0xf0] sm:$0xff]
    %v352 = vld [vmem:[%s3 + $0xf8] sm:$0xff]
    %v353 = vld [vmem:[%s4] sm:$0x1]
    %v355 = vperm.slane %v353, 0
    %357 = vmatpush.msra.mxu0 %v336
    %358 = vmatpush.msra.mxu0 %v335
    %359 = vmatpush.msra.mxu0 %v334
    %360 = vmatpush.msra.mxu0 %v333
    %361 = vmatpush.msra.mxu0 %v332
    %362 = vmatpush.msra.mxu0 %v331
    %363 = vmatpush.msra.mxu0 %v330
    %364 = vmatpush.msra.mxu0 %v329
    %365 = vmatpush.msra.mxu0 %v328
    %366 = vmatpush.msra.mxu0 %v327
    %367 = vmatpush.msra.mxu0 %v326
    %368 = vmatpush.msra.mxu0 %v325
    %369 = vmatpush.msra.mxu0 %v324
    %370 = vmatpush.msra.mxu0 %v323
    %371 = vmatpush.msra.mxu0 %v322
    %372 = vmatpush.msra.mxu0 %v321
    %373 = vmatmul.f32.gmra.mxu0 %v319
    %v374 = vpop.f32.mrf.mxu0
    %v375 = vadd.f32 %v355, %v374
    %376 = vdwg.mxu0
    %377 = vmatpush.msra.mxu0 %v352
    %378 = vmatpush.msra.mxu0 %v351
    %379 = vmatpush.msra.mxu0 %v350
    %380 = vmatpush.msra.mxu0 %v349
    %381 = vmatpush.msra.mxu0 %v348
    %382 = vmatpush.msra.mxu0 %v347
    %383 = vmatpush.msra.mxu0 %v346
    %384 = vmatpush.msra.mxu0 %v345
    %385 = vmatpush.msra.mxu0 %v344
    %386 = vmatpush.msra.mxu0 %v343
    %387 = vmatpush.msra.mxu0 %v342
    %388 = vmatpush.msra.mxu0 %v341
    %389 = vmatpush.msra.mxu0 %v340
    %390 = vmatpush.msra.mxu0 %v339
    %391 = vmatpush.msra.mxu0 %v338
    %392 = vmatpush.msra.mxu0 %v337
    %393 = vmatmul.f32.gmra.mxu0 %v320
    %v394 = vpop.f32.mrf.mxu0
    %v395 = vadd.f32 %v375, %v394
    %396 = vdwg.mxu0
    %397 = vst [vmem:[#allocation2] sm:$0xff] %v395
    // Predicated region
    $region22: #{classification_head.1} parent=1 // pred_check
      _
    $region23: #{classification_head.1} parent=1 // pred_check_branch
      %399 = sbr.rel (0) target = $region25
    $region24: #{classification_head.1} parent=1 // pred_region
      %401 = vsyncadd [#allocation3], 0
      %s403 = sshll.u32 [#allocation2], 4
      %s404 = int_to_ptr.vmem [resolvable:$true] %s403
      %s405 = sshll.u32 %s5, 4
      %s406 = int_to_ptr.hbm [resolvable:$true] %s405
      %408 = dma.vmem_to_hbm [thread:$0]  %s404, 128, %s406, [#allocation3]
    $region25: #{classification_head.1} parent=1 // pred_fallthru
      _
    // Predicated region
    $region26: #{classification_head.1} parent=1 // pred_check
      _
    $region27: #{classification_head.1} parent=1 // pred_check_branch
      %410 = sbr.rel (0) target = $region29
    $region28: #{classification_head.1} parent=1 // pred_region
      %412 = dma.done [#allocation3], 128
    $region29: #{classification_head.1} parent=1 // pred_fallthru
      _
    %413 = vsyncpa [#allocation3], 1

</llo_original>
